<compile_context>
chip_gen: v7x
topology: tpu7x:2x2x1
jax: 0.10.0
libtpu: 0.0.40
codegen_flags: <defaults>
</compile_context>

<pallas_src>
import functools

import jax
import jax.numpy as jnp
from jax.experimental import pallas as pl
from jax.experimental.pallas import tpu as pltpu

HIDDEN = 128   # hidden width of the DQN MLP
LANE = 128     # TPU lane width (head is lane-padded in VMEM only)


def _round_up(n, m):
    return ((n + m - 1) // m) * m


def _choose_tile(B, cap=512):
    # Multiple of 8; one tile for small batches; capped so large batches
    # pipeline (and can spread over both v7x TensorCores).
    return min(cap, _round_up(B, 8))


# ---------------------------------------------------------------------------
# Kernel (shared by the single forward and the stacked online/target forward)
# ---------------------------------------------------------------------------
def dqn_kernel(x_ref, w1_ref, b1_ref, w2_ref, b2_ref, w3_ref, b3_ref, o_ref,
               *, state_dim, action_dim):
    x = x_ref[...]          # (tb, state_dim) f32
    w1 = w1_ref[...]        # (state_dim, HIDDEN) f32

    # Layer 1: K = state_dim (4) contraction as VPU broadcast-FMAs -- cheaper
    # and layout-friendlier than padding K up to 128 for the MXU.
    h = b1_ref[...]                                   # (1, HIDDEN)
    for k in range(state_dim):                        # static unroll
        h = h + x[:, k:k + 1] * w1[k:k + 1, :]
    h1 = jnp.maximum(h, 0.0)                          # (tb, HIDDEN)

    # Layer 2: clean 128x128 MXU tile (optionally bf16 operands, f32 accum).
    h2 = jnp.dot(h1.astype(w2_ref.dtype), w2_ref[...],
                 preferred_element_type=jnp.float32) + b2_ref[...]
    h2 = jnp.maximum(h2, 0.0)

    # Layer 3: head weights are lane-padded to 128 in VMEM (clean MXU tile);
    # only the real action lanes are stored back to HBM.
    q = jnp.dot(h2.astype(w3_ref.dtype), w3_ref[...],
                preferred_element_type=jnp.float32) + b3_ref[...]
    o_ref[...] = q[:, :action_dim]


# ---------------------------------------------------------------------------
# Parameter preparation (call once at init / on target-net sync, NOT per step)
# ---------------------------------------------------------------------------
def prepare_params(params, dtype=jnp.float32):
    """Pad/cast raw params once. Returns a dict consumed by the forwards."""
    S, H = params["w1"].shape
    A = params["w3"].shape[1]
    a_pad = _round_up(A, LANE)
    w3p = jnp.zeros((H, a_pad), dtype).at[:, :A].set(params["w3"].astype(dtype))
    b3p = jnp.zeros((1, a_pad), jnp.float32).at[:, :A].set(
        params["b3"].reshape(1, A).astype(jnp.float32))
    return {
        "w1": params["w1"].astype(jnp.float32),
        "b1": params["b1"].reshape(1, H).astype(jnp.float32),
        "w2": params["w2"].astype(dtype),
        "b2": params["b2"].reshape(1, H).astype(jnp.float32),
        "w3": w3p,
        "b3": b3p,
        "state_dim": S,
        "action_dim": A,
    }


def prepare_dual_params(online_params, target_params, dtype=jnp.float32):
    """Stack online/target params on a leading size-2 axis (once per sync)."""
    po = prepare_params(online_params, dtype)
    pt = prepare_params(target_params, dtype)
    out = {k: jnp.stack([po[k], pt[k]])
           for k in ("w1", "b1", "w2", "b2", "w3", "b3")}
    out["state_dim"] = po["state_dim"]
    out["action_dim"] = po["action_dim"]
    return out


_PARAM_KEYS = ("w1", "b1", "w2", "b2", "w3", "b3")


# ---------------------------------------------------------------------------
# Public forwards
# ---------------------------------------------------------------------------
def dqn_forward(x, prepared, *, tile_cap=512):
    """x: [B, state_dim]. prepared: prepare_params(...). Returns [B, action_dim]."""
    B, S = x.shape
    A = prepared["action_dim"]
    tb = _choose_tile(B, tile_cap)
    nb = pl.cdiv(B, tb)                       # ragged last tile is masked

    ws = tuple(prepared[k] for k in _PARAM_KEYS)
    kern = functools.partial(dqn_kernel, state_dim=S, action_dim=A)

    return pl.pallas_call(
        kern,
        out_shape=jax.ShapeDtypeStruct((B, A), jnp.float32),
        grid=(nb,),
        in_specs=[pl.BlockSpec((tb, S), lambda i: (i, 0))]
                 + [pl.BlockSpec(w.shape, lambda i: (0, 0)) for w in ws],
        out_specs=pl.BlockSpec((tb, A), lambda i: (i, 0)),
        compiler_params=pltpu.CompilerParams(
            dimension_semantics=("parallel",)),
    )(x.astype(jnp.float32), *ws)


def dqn_forward_online_target(x_s, x_next, prepared_dual, *, tile_cap=512):
    """Fused online(s) / target(s') forward in one launch.

    prepared_dual: prepare_dual_params(...). Returns (q_online [B,A], q_target [B,A]).
    The size-2 network axis is a leading 'parallel' grid dim, so on v7x one
    TensorCore runs the online net while the other runs the target net.
    """
    assert x_s.shape == x_next.shape, (x_s.shape, x_next.shape)
    B, S = x_s.shape
    A = prepared_dual["action_dim"]
    tb = _choose_tile(B, tile_cap)
    nb = pl.cdiv(B, tb)

    x2 = jnp.stack([x_s, x_next]).astype(jnp.float32)   # [2, B, S]
    ws = tuple(prepared_dual[k] for k in _PARAM_KEYS)    # each [2, ...]
    kern = functools.partial(dqn_kernel, state_dim=S, action_dim=A)

    def _wspec(w):
        return pl.BlockSpec((None,) + w.shape[1:], lambda n, i: (n, 0, 0))

    q2 = pl.pallas_call(
        kern,
        out_shape=jax.ShapeDtypeStruct((2, B, A), jnp.float32),
        grid=(2, nb),
        in_specs=[pl.BlockSpec((None, tb, S), lambda n, i: (n, i, 0))]
                 + [_wspec(w) for w in ws],
        out_specs=pl.BlockSpec((None, tb, A), lambda n, i: (n, i, 0)),
        compiler_params=pltpu.CompilerParams(
            dimension_semantics=("parallel", "parallel")),
    )(x2, *ws)
    return q2[0], q2[1]


# ---------------------------------------------------------------------------
# Init / reference
# ---------------------------------------------------------------------------
def init_params(key, state_dim, action_dim, hidden=HIDDEN):
    # nn.Linear-style init: U(-1/sqrt(fan_in), 1/sqrt(fan_in)) for W and b.
    ks = jax.random.split(key, 6)

    def lin(kw, kb, fan_in, fan_out):
        bound = 1.0 / jnp.sqrt(jnp.float32(fan_in))
        w = jax.random.uniform(kw, (fan_in, fan_out), jnp.float32, -bound, bound)
        b = jax.random.uniform(kb, (1, fan_out), jnp.float32, -bound, bound)
        return w, b

    w1, b1 = lin(ks[0], ks[1], state_dim, hidden)
    w2, b2 = lin(ks[2], ks[3], hidden, hidden)
    w3, b3 = lin(ks[4], ks[5], hidden, action_dim)
    return {"w1": w1, "b1": b1, "w2": w2, "b2": b2, "w3": w3, "b3": b3}


def reference_forward(x, p):
    h1 = jnp.maximum(x @ p["w1"] + p["b1"], 0.0)
    h2 = jnp.maximum(h1 @ p["w2"] + p["b2"], 0.0)
    return h2 @ p["w3"] + p["b3"]


# ---------------------------------------------------------------------------
if __name__ == "__main__":
    state_dim = 4    # CartPole-v1 observation dim
    action_dim = 2   # CartPole-v1 action dim

    key = jax.random.PRNGKey(0)
    kx1, kx2, kp1, kp2 = jax.random.split(key, 4)

    online = init_params(kp1, state_dim, action_dim)
    target = init_params(kp2, state_dim, action_dim)

    # Prepared (padded/cast) params: built once, reused every step.
    prep_f32 = prepare_params(online, jnp.float32)
    prep_bf16 = prepare_params(online, jnp.bfloat16)
    prep_dual = prepare_dual_params(online, target, jnp.float32)

    # --- single-network forward, batch not a multiple of 8 (ragged tile) ---
    x = jax.random.normal(kx1, (12, state_dim), jnp.float32)
    ref = reference_forward(x, online)

    out = jax.block_until_ready(dqn_forward(x, prep_f32))
    assert out.shape == (12, action_dim), out.shape
    assert jnp.allclose(out, ref, atol=2e-4, rtol=2e-4), "f32 forward mismatch"

    # multi-tile + ragged last tile path (tb=8, grid=2)
    out_mt = jax.block_until_ready(dqn_forward(x, prep_f32, tile_cap=8))
    assert jnp.allclose(out_mt, ref, atol=2e-4, rtol=2e-4), "multi-tile mismatch"

    # B=1 action-selection path
    x1 = x[:1]
    out1 = jax.block_until_ready(dqn_forward(x1, prep_f32))
    assert out1.shape == (1, action_dim)
    assert jnp.allclose(out1, ref[:1], atol=2e-4, rtol=2e-4), "B=1 mismatch"

    # bf16 matmul operands, f32 accumulation
    out_bf = jax.block_until_ready(dqn_forward(x, prep_bf16))
    assert jnp.allclose(out_bf, ref, atol=5e-2, rtol=5e-2), "bf16 forward mismatch"

    # --- fused online + target forward (replay-batch style) ---
    xs = jax.random.normal(kx1, (12, state_dim), jnp.float32)
    xn = jax.random.normal(kx2, (12, state_dim), jnp.float32)
    qo, qt = dqn_forward_online_target(xs, xn, prep_dual)
    qo = jax.block_until_ready(qo)
    qt = jax.block_until_ready(qt)
    assert qo.shape == (12, action_dim) and qt.shape == (12, action_dim)
    assert jnp.allclose(qo, reference_forward(xs, online), atol=2e-4, rtol=2e-4), \
        "fused online mismatch"
    assert jnp.allclose(qt, reference_forward(xn, target), atol=2e-4, rtol=2e-4), \
        "fused target mismatch"

    print("KERNEL_OK")
</pallas_src>

<mosaic_0001>
module attributes {stable_mosaic.version = 11 : i64} {
  func.func @dqn_kernel(%arg0: i32, %arg1: memref<16x4xf32, #tpu.memory_space<vmem>>, %arg2: memref<4x128xf32, #tpu.memory_space<vmem>>, %arg3: memref<1x128xf32, #tpu.memory_space<vmem>>, %arg4: memref<128x128xf32, #tpu.memory_space<vmem>>, %arg5: memref<1x128xf32, #tpu.memory_space<vmem>>, %arg6: memref<128x128xf32, #tpu.memory_space<vmem>>, %arg7: memref<1x128xf32, #tpu.memory_space<vmem>>, %arg8: memref<16x2xf32, #tpu.memory_space<vmem>>) attributes {dimension_semantics = [#tpu.dimension_semantics<parallel>], iteration_bounds = array<i64: 1>, scalar_prefetch = 0 : i64, scratch_operands = 0 : i64, tpu.core_type = #tpu.core_type<tc>, window_params = [{transform_indices = @transform_0, window_bounds = array<i64: 16, 4>}, {pipeline_mode = #tpu.pipeline_mode<synchronous>, transform_indices = @transform_1, window_bounds = array<i64: 4, 128>}, {pipeline_mode = #tpu.pipeline_mode<synchronous>, transform_indices = @transform_2, window_bounds = array<i64: 1, 128>}, {pipeline_mode = #tpu.pipeline_mode<synchronous>, transform_indices = @transform_3, window_bounds = array<i64: 128, 128>}, {pipeline_mode = #tpu.pipeline_mode<synchronous>, transform_indices = @transform_4, window_bounds = array<i64: 1, 128>}, {pipeline_mode = #tpu.pipeline_mode<synchronous>, transform_indices = @transform_5, window_bounds = array<i64: 128, 128>}, {pipeline_mode = #tpu.pipeline_mode<synchronous>, transform_indices = @transform_6, window_bounds = array<i64: 1, 128>}, {transform_indices = @transform_7, window_bounds = array<i64: 16, 2>}]} {
    %c0 = arith.constant 0 : index
    %c0_0 = arith.constant 0 : index
    %0 = vector.load %arg1[%c0, %c0_0] : memref<16x4xf32, #tpu.memory_space<vmem>>, vector<16x4xf32>
    %c0_1 = arith.constant 0 : index
    %c0_2 = arith.constant 0 : index
    %1 = vector.load %arg2[%c0_1, %c0_2] : memref<4x128xf32, #tpu.memory_space<vmem>>, vector<4x128xf32>
    %c0_3 = arith.constant 0 : index
    %c0_4 = arith.constant 0 : index
    %2 = vector.load %arg3[%c0_3, %c0_4] : memref<1x128xf32, #tpu.memory_space<vmem>>, vector<1x128xf32>
    %3 = vector.extract_strided_slice %0 {offsets = [0, 0], sizes = [16, 1], strides = [1, 1]} : vector<16x4xf32> to vector<16x1xf32>
    %4 = vector.extract_strided_slice %1 {offsets = [0, 0], sizes = [1, 128], strides = [1, 1]} : vector<4x128xf32> to vector<1x128xf32>
    %5 = vector.broadcast %3 : vector<16x1xf32> to vector<16x128xf32>
    %6 = vector.broadcast %4 : vector<1x128xf32> to vector<16x128xf32>
    %7 = arith.mulf %5, %6 : vector<16x128xf32>
    %8 = vector.broadcast %2 : vector<1x128xf32> to vector<16x128xf32>
    %9 = arith.addf %8, %7 : vector<16x128xf32>
    %10 = vector.extract_strided_slice %0 {offsets = [0, 1], sizes = [16, 1], strides = [1, 1]} : vector<16x4xf32> to vector<16x1xf32>
    %11 = vector.extract_strided_slice %1 {offsets = [1, 0], sizes = [1, 128], strides = [1, 1]} : vector<4x128xf32> to vector<1x128xf32>
    %12 = vector.broadcast %10 : vector<16x1xf32> to vector<16x128xf32>
    %13 = vector.broadcast %11 : vector<1x128xf32> to vector<16x128xf32>
    %14 = arith.mulf %12, %13 : vector<16x128xf32>
    %15 = arith.addf %9, %14 : vector<16x128xf32>
    %16 = vector.extract_strided_slice %0 {offsets = [0, 2], sizes = [16, 1], strides = [1, 1]} : vector<16x4xf32> to vector<16x1xf32>
    %17 = vector.extract_strided_slice %1 {offsets = [2, 0], sizes = [1, 128], strides = [1, 1]} : vector<4x128xf32> to vector<1x128xf32>
    %18 = vector.broadcast %16 : vector<16x1xf32> to vector<16x128xf32>
    %19 = vector.broadcast %17 : vector<1x128xf32> to vector<16x128xf32>
    %20 = arith.mulf %18, %19 : vector<16x128xf32>
    %21 = arith.addf %15, %20 : vector<16x128xf32>
    %22 = vector.extract_strided_slice %0 {offsets = [0, 3], sizes = [16, 1], strides = [1, 1]} : vector<16x4xf32> to vector<16x1xf32>
    %23 = vector.extract_strided_slice %1 {offsets = [3, 0], sizes = [1, 128], strides = [1, 1]} : vector<4x128xf32> to vector<1x128xf32>
    %24 = vector.broadcast %22 : vector<16x1xf32> to vector<16x128xf32>
    %25 = vector.broadcast %23 : vector<1x128xf32> to vector<16x128xf32>
    %26 = arith.mulf %24, %25 : vector<16x128xf32>
    %27 = arith.addf %21, %26 : vector<16x128xf32>
    %cst = arith.constant 0.000000e+00 : f32
    %28 = vector.broadcast %cst : f32 to vector<16x128xf32>
    %29 = arith.maximumf %27, %28 : vector<16x128xf32>
    %c0_5 = arith.constant 0 : index
    %c0_6 = arith.constant 0 : index
    %30 = vector.load %arg4[%c0_5, %c0_6] : memref<128x128xf32, #tpu.memory_space<vmem>>, vector<128x128xf32>
    %cst_7 = arith.constant dense<0.000000e+00> : vector<16x128xf32>
    %31 = tpu.matmul %29, %30, %cst_7 {dimension_numbers = #tpu.dot_dimension_numbers<[1], [0], [0], [1], [0, 0, 1, 1], [], []>} : vector<16x128xf32>, vector<128x128xf32>, vector<16x128xf32> -> vector<16x128xf32>
    %c0_8 = arith.constant 0 : index
    %c0_9 = arith.constant 0 : index
    %32 = vector.load %arg5[%c0_8, %c0_9] : memref<1x128xf32, #tpu.memory_space<vmem>>, vector<1x128xf32>
    %33 = vector.broadcast %32 : vector<1x128xf32> to vector<16x128xf32>
    %34 = arith.addf %31, %33 : vector<16x128xf32>
    %cst_10 = arith.constant 0.000000e+00 : f32
    %35 = vector.broadcast %cst_10 : f32 to vector<16x128xf32>
    %36 = arith.maximumf %34, %35 : vector<16x128xf32>
    %c0_11 = arith.constant 0 : index
    %c0_12 = arith.constant 0 : index
    %37 = vector.load %arg6[%c0_11, %c0_12] : memref<128x128xf32, #tpu.memory_space<vmem>>, vector<128x128xf32>
    %cst_13 = arith.constant dense<0.000000e+00> : vector<16x128xf32>
    %38 = tpu.matmul %36, %37, %cst_13 {dimension_numbers = #tpu.dot_dimension_numbers<[1], [0], [0], [1], [0, 0, 1, 1], [], []>} : vector<16x128xf32>, vector<128x128xf32>, vector<16x128xf32> -> vector<16x128xf32>
    %c0_14 = arith.constant 0 : index
    %c0_15 = arith.constant 0 : index
    %39 = vector.load %arg7[%c0_14, %c0_15] : memref<1x128xf32, #tpu.memory_space<vmem>>, vector<1x128xf32>
    %40 = vector.broadcast %39 : vector<1x128xf32> to vector<16x128xf32>
    %41 = arith.addf %38, %40 : vector<16x128xf32>
    %42 = vector.extract_strided_slice %41 {offsets = [0, 0], sizes = [16, 2], strides = [1, 1]} : vector<16x128xf32> to vector<16x2xf32>
    %c0_16 = arith.constant 0 : index
    %c0_17 = arith.constant 0 : index
    %43 = vector.load %arg8[%c0_16, %c0_17] : memref<16x2xf32, #tpu.memory_space<vmem>>, vector<16x2xf32>
    tpu.vector_store %arg8[%c0_16, %c0_17], %42 {strides = array<i32>} : memref<16x2xf32, #tpu.memory_space<vmem>>, vector<16x2xf32>,
    return
  }
  func.func @transform_0(%arg0: i32) -> (i32, i32) {
    %c0_i32 = arith.constant 0 : i32
    %c0_i32_0 = arith.constant 0 : i32
    return %arg0, %c0_i32 : i32, i32
  }
  func.func @transform_1(%arg0: i32) -> (i32, i32) {
    %c0_i32 = arith.constant 0 : i32
    %c0_i32_0 = arith.constant 0 : i32
    %c0_i32_1 = arith.constant 0 : i32
    return %c0_i32, %c0_i32_0 : i32, i32
  }
  func.func @transform_2(%arg0: i32) -> (i32, i32) {
    %c0_i32 = arith.constant 0 : i32
    %c0_i32_0 = arith.constant 0 : i32
    %c0_i32_1 = arith.constant 0 : i32
    return %c0_i32, %c0_i32_0 : i32, i32
  }
  func.func @transform_3(%arg0: i32) -> (i32, i32) {
    %c0_i32 = arith.constant 0 : i32
    %c0_i32_0 = arith.constant 0 : i32
    %c0_i32_1 = arith.constant 0 : i32
    return %c0_i32, %c0_i32_0 : i32, i32
  }
  func.func @transform_4(%arg0: i32) -> (i32, i32) {
    %c0_i32 = arith.constant 0 : i32
    %c0_i32_0 = arith.constant 0 : i32
    %c0_i32_1 = arith.constant 0 : i32
    return %c0_i32, %c0_i32_0 : i32, i32
  }
  func.func @transform_5(%arg0: i32) -> (i32, i32) {
    %c0_i32 = arith.constant 0 : i32
    %c0_i32_0 = arith.constant 0 : i32
    %c0_i32_1 = arith.constant 0 : i32
    return %c0_i32, %c0_i32_0 : i32, i32
  }
  func.func @transform_6(%arg0: i32) -> (i32, i32) {
    %c0_i32 = arith.constant 0 : i32
    %c0_i32_0 = arith.constant 0 : i32
    %c0_i32_1 = arith.constant 0 : i32
    return %c0_i32, %c0_i32_0 : i32, i32
  }
  func.func @transform_7(%arg0: i32) -> (i32, i32) {
    %c0_i32 = arith.constant 0 : i32
    %c0_i32_0 = arith.constant 0 : i32
    return %arg0, %c0_i32 : i32, i32
  }
}

</mosaic_0001>

<llo_original>
// kernel: tpu_custom_call.1
$region0: #{tpu_custom_call.1}
  #allocation0 [shape = 'u32[]', space=smem, size = 0x4, offset = 0x4, fixed_abs, tag = 'smem constant byte address 0x4 - core index']
  #allocation1 [shape = 'u32[144,128]{1,0:T(1,128)}', space=vmem, size = 0x12000, scoped, tag = 'internal scratch']
  %s0 = inlined_call_operand.vmem [shape: f32[12,4], index: 0, kind: input, shape index: {}]
  %s1 = inlined_call_operand.vmem [shape: f32[4,128], index: 1, kind: input, shape index: {}]
  %s2 = inlined_call_operand.vmem [shape: f32[1,128], index: 2, kind: input, shape index: {}]
  %s3 = inlined_call_operand.hbm [shape: f32[128,128], index: 3, kind: input, shape index: {}]
  %s4 = inlined_call_operand.vmem [shape: f32[1,128], index: 4, kind: input, shape index: {}]
  %s5 = inlined_call_operand.hbm [shape: f32[128,128], index: 5, kind: input, shape index: {}]
  %s6 = inlined_call_operand.vmem [shape: f32[1,128], index: 6, kind: input, shape index: {}]
  %s7 = inlined_call_operand.vmem [shape: f32[12,2], index: 7, kind: output, shape index: {}]
  %s8 = sld [smem:[#allocation0]]
  $region46: #{tpu_custom_call.1} parent=0
    _
  %s10 = ssub.s32 1, %s8
  %s11 = scalar_select 0, %s10, %s8
  $region1: #{tpu_custom_call.1} parent=0
    #allocation2 [shape = 'u8[65536]{0}', space=vmem, size = 0x10000, scoped, tag = 'input window, operand 3, single buffered']
    #allocation3 [shape = 's32[1]{0}', space=sflag, size = 0x4, scoped, tag = 'scoped memory for tpu_custom_call.1']
    #allocation4 [shape = 'u8[65536]{0}', space=vmem, size = 0x10000, scoped, tag = 'input window, operand 5, single buffered']
    #allocation5 [shape = 's32[1]{0}', space=sflag, size = 0x4, scoped, tag = 'scoped memory for tpu_custom_call.1']
    %12 = vsyncpa [#allocation3], 0
    %13 = vsyncpa [#allocation5], 0
    // Predicated region
    $region2: #{tpu_custom_call.1} parent=1 // pred_check
      _
    $region3: #{tpu_custom_call.1} parent=1 // pred_check_branch
      %15 = sbr.rel (0) target = $region5
    $region4: #{tpu_custom_call.1} parent=1 // pred_region
      _
    $region5: #{tpu_custom_call.1} parent=1 // pred_fallthru
      _
    // Predicated region
    $region6: #{tpu_custom_call.1} parent=1 // pred_check
      _
    $region7: #{tpu_custom_call.1} parent=1 // pred_check_branch
      %17 = sbr.rel (0) target = $region9
    $region8: #{tpu_custom_call.1} parent=1 // pred_region
      _
    $region9: #{tpu_custom_call.1} parent=1 // pred_fallthru
      _
    // Predicated region
    $region10: #{tpu_custom_call.1} parent=1 // pred_check
      _
    $region11: #{tpu_custom_call.1} parent=1 // pred_check_branch
      %19 = sbr.rel (0) target = $region13
    $region12: #{tpu_custom_call.1} parent=1 // pred_region
      _
    $region13: #{tpu_custom_call.1} parent=1 // pred_fallthru
      _
    // Predicated region
    $region14: #{tpu_custom_call.1} parent=1 // pred_check
      _
    $region15: #{tpu_custom_call.1} parent=1 // pred_check_branch
      %21 = sbr.rel (0) target = $region17
    $region16: #{tpu_custom_call.1} parent=1 // pred_region
      %s23 = ssub.s32 2048, 2048
      %24 = vsyncadd [#allocation3], %s23
      %s25 = sshll.u32 [#allocation2], 4
      %s26 = int_to_ptr.vmem [resolvable:$true] %s25
      %31 = dma.hbm_to_vmem [thread:$0]  %s3, 2048, %s26, [#allocation3], 128, 128, 8
    $region17: #{tpu_custom_call.1} parent=1 // pred_fallthru
      _
    // Predicated region
    $region18: #{tpu_custom_call.1} parent=1 // pred_check
      _
    $region19: #{tpu_custom_call.1} parent=1 // pred_check_branch
      %33 = sbr.rel (0) target = $region21
    $region20: #{tpu_custom_call.1} parent=1 // pred_region
      _
    $region21: #{tpu_custom_call.1} parent=1 // pred_fallthru
      _
    // Predicated region
    $region22: #{tpu_custom_call.1} parent=1 // pred_check
      _
    $region23: #{tpu_custom_call.1} parent=1 // pred_check_branch
      %35 = sbr.rel (0) target = $region25
    $region24: #{tpu_custom_call.1} parent=1 // pred_region
      %s37 = ssub.s32 2048, 2048
      %38 = vsyncadd [#allocation5], %s37
      %s39 = sshll.u32 [#allocation4], 4
      %s40 = int_to_ptr.vmem [resolvable:$true] %s39
      %45 = dma.hbm_to_vmem [thread:$0]  %s5, 2048, %s40, [#allocation5], 128, 128, 8
    $region25: #{tpu_custom_call.1} parent=1 // pred_fallthru
      _
    // Predicated region
    $region26: #{tpu_custom_call.1} parent=1 // pred_check
      _
    $region27: #{tpu_custom_call.1} parent=1 // pred_check_branch
      %47 = sbr.rel (0) target = $region29
    $region28: #{tpu_custom_call.1} parent=1 // pred_region
      _
    $region29: #{tpu_custom_call.1} parent=1 // pred_fallthru
      _
    // Predicated region
    $region30: #{tpu_custom_call.1} parent=1 // pred_check
      _
    $region31: #{tpu_custom_call.1} parent=1 // pred_check_branch
      %49 = sbr.rel (0) target = $region33
    $region32: #{tpu_custom_call.1} parent=1 // pred_region
      %50 = dma.done [#allocation3], 2048
    $region33: #{tpu_custom_call.1} parent=1 // pred_fallthru
      _
    // Predicated region
    $region34: #{tpu_custom_call.1} parent=1 // pred_check
      _
    $region35: #{tpu_custom_call.1} parent=1 // pred_check_branch
      %52 = sbr.rel (0) target = $region37
    $region36: #{tpu_custom_call.1} parent=1 // pred_region
      %53 = dma.done [#allocation5], 2048
    $region37: #{tpu_custom_call.1} parent=1 // pred_fallthru
      _
    %v54 = vld [vmem:[%s0] sm:$0xff]
    %v55 = vld [vmem:[%s0 + $0x8] sm:$0xff]
    %v56 = vld [vmem:[%s1] sm:$0xf]
    %v57 = vld [vmem:[%s2] sm:$0x1]
    %59 = vset.pattern.permute.xlu0 0
    %60 = vperm.xlu0 %59, %v54
    %v61 = vpop.permute.xlu0 %60
    %64 = vset.pattern.permute.xlu0 0
    %65 = vperm.xlu0 %64, %v55
    %v66 = vpop.permute.xlu0 %65
    %v68 = vlaneseq
    %v69 = vshrl.u32 %v68, 7
    %v70 = vsub.s32 0, %v69
    %v71 = vrot.slane %v56, %v70
    %v72 = vmul.f32 %v61, %v71
    %v73 = vmul.f32 %v66, %v71
    %v75 = vlaneseq
    %v76 = vshrl.u32 %v75, 7
    %v77 = vsub.s32 0, %v76
    %v78 = vrot.slane %v57, %v77
    %v80 = vadd.f32 %v78, %v72
    %v81 = vadd.f32 %v78, %v73
    %82 = vset.pattern.permute.xlu0 1
    %83 = vperm.xlu0 %82, %v54
    %v84 = vpop.permute.xlu0 %83
    %86 = vset.pattern.permute.xlu0 1
    %87 = vperm.xlu0 %86, %v55
    %v88 = vpop.permute.xlu0 %87
    %v90 = vlaneseq
    %v91 = vshrl.u32 %v90, 7
    %v92 = vsub.s32 1, %v91
    %v93 = vrot.slane %v56, %v92
    %v94 = vmul.f32 %v84, %v93
    %v95 = vmul.f32 %v88, %v93
    %v96 = vadd.f32 %v80, %v94
    %v97 = vadd.f32 %v81, %v95
    %98 = vset.pattern.permute.xlu0 2
    %99 = vperm.xlu0 %98, %v54
    %v100 = vpop.permute.xlu0 %99
    %102 = vset.pattern.permute.xlu0 2
    %103 = vperm.xlu0 %102, %v55
    %v104 = vpop.permute.xlu0 %103
    %v106 = vlaneseq
    %v107 = vshrl.u32 %v106, 7
    %v108 = vsub.s32 2, %v107
    %v109 = vrot.slane %v56, %v108
    %v110 = vmul.f32 %v100, %v109
    %v111 = vmul.f32 %v104, %v109
    %v112 = vadd.f32 %v96, %v110
    %v113 = vadd.f32 %v97, %v111
    %114 = vset.pattern.permute.xlu0 3
    %115 = vperm.xlu0 %114, %v54
    %v116 = vpop.permute.xlu0 %115
    %118 = vset.pattern.permute.xlu0 3
    %119 = vperm.xlu0 %118, %v55
    %v120 = vpop.permute.xlu0 %119
    %v122 = vlaneseq
    %v123 = vshrl.u32 %v122, 7
    %v124 = vsub.s32 3, %v123
    %v125 = vrot.slane %v56, %v124
    %v126 = vmul.f32 %v116, %v125
    %v127 = vmul.f32 %v120, %v125
    %v128 = vadd.f32 %v112, %v126
    %v129 = vadd.f32 %v113, %v127
    %v130 = vmax.f32 %v128, 0.0
    %v131 = vmax.f32 %v129, 0.0
    %v132 = vld [vmem:[#allocation2] sm:$0xff]
    %v133 = vld [vmem:[#allocation2 + $0x8] sm:$0xff]
    %v134 = vld [vmem:[#allocation2 + $0x10] sm:$0xff]
    %v135 = vld [vmem:[#allocation2 + $0x18] sm:$0xff]
    %v136 = vld [vmem:[#allocation2 + $0x20] sm:$0xff]
    %v137 = vld [vmem:[#allocation2 + $0x28] sm:$0xff]
    %v138 = vld [vmem:[#allocation2 + $0x30] sm:$0xff]
    %v139 = vld [vmem:[#allocation2 + $0x38] sm:$0xff]
    %v140 = vld [vmem:[#allocation2 + $0x40] sm:$0xff]
    %v141 = vld [vmem:[#allocation2 + $0x48] sm:$0xff]
    %v142 = vld [vmem:[#allocation2 + $0x50] sm:$0xff]
    %v143 = vld [vmem:[#allocation2 + $0x58] sm:$0xff]
    %v144 = vld [vmem:[#allocation2 + $0x60] sm:$0xff]
    %v145 = vld [vmem:[#allocation2 + $0x68] sm:$0xff]
    %v146 = vld [vmem:[#allocation2 + $0x70] sm:$0xff]
    %v147 = vld [vmem:[#allocation2 + $0x78] sm:$0xff]
    %v148 = vld [vmem:[%s4] sm:$0x1]
    %v150 = vlaneseq
    %v151 = vshrl.u32 %v150, 7
    %v152 = vsub.s32 0, %v151
    %v153 = vrot.slane %v148, %v152
    %155 = vmatprep.subr.mxu0 0.0
    %156 = vmatpush1.msra.mxu0 %v132
    %157 = vmatprep.subr.mxu0 0.0
    %158 = vmatpush1.msra.mxu0 %v133
    %159 = vmatprep.subr.mxu0 0.0
    %160 = vmatpush1.msra.mxu0 %v134
    %161 = vmatprep.subr.mxu0 0.0
    %162 = vmatpush1.msra.mxu0 %v135
    %163 = vmatprep.subr.mxu0 0.0
    %164 = vmatpush1.msra.mxu0 %v136
    %165 = vmatprep.subr.mxu0 0.0
    %166 = vmatpush1.msra.mxu0 %v137
    %167 = vmatprep.subr.mxu0 0.0
    %168 = vmatpush1.msra.mxu0 %v138
    %169 = vmatprep.subr.mxu0 0.0
    %170 = vmatpush1.msra.mxu0 %v139
    %171 = vmatprep.subr.mxu0 0.0
    %172 = vmatpush1.msra.mxu0 %v140
    %173 = vmatprep.subr.mxu0 0.0
    %174 = vmatpush1.msra.mxu0 %v141
    %175 = vmatprep.subr.mxu0 0.0
    %176 = vmatpush1.msra.mxu0 %v142
    %177 = vmatprep.subr.mxu0 0.0
    %178 = vmatpush1.msra.mxu0 %v143
    %179 = vmatprep.subr.mxu0 0.0
    %180 = vmatpush1.msra.mxu0 %v144
    %181 = vmatprep.subr.mxu0 0.0
    %182 = vmatpush1.msra.mxu0 %v145
    %183 = vmatprep.subr.mxu0 0.0
    %184 = vmatpush1.msra.mxu0 %v146
    %185 = vmatprep.subr.mxu0 0.0
    %186 = vmatpush1.msra.mxu0 %v147
    %187 = vmatprep.subr.mxu0 0.0
    %188 = vmatpush1.msra.mxu0 0.0
    %189 = vmatprep.subr.mxu0 0.0
    %190 = vmatpush1.msra.mxu0 0.0
    %191 = vmatprep.subr.mxu0 0.0
    %192 = vmatpush1.msra.mxu0 0.0
    %193 = vmatprep.subr.mxu0 0.0
    %194 = vmatpush1.msra.mxu0 0.0
    %195 = vmatprep.subr.mxu0 0.0
    %196 = vmatpush1.msra.mxu0 0.0
    %197 = vmatprep.subr.mxu0 0.0
    %198 = vmatpush1.msra.mxu0 0.0
    %199 = vmatprep.subr.mxu0 0.0
    %200 = vmatpush1.msra.mxu0 0.0
    %201 = vmatprep.subr.mxu0 0.0
    %202 = vmatpush1.msra.mxu0 0.0
    %203 = vmatprep.subr.mxu0 0.0
    %204 = vmatpush1.msra.mxu0 0.0
    %205 = vmatprep.subr.mxu0 0.0
    %206 = vmatpush1.msra.mxu0 0.0
    %207 = vmatprep.subr.mxu0 0.0
    %208 = vmatpush1.msra.mxu0 0.0
    %209 = vmatprep.subr.mxu0 0.0
    %210 = vmatpush1.msra.mxu0 0.0
    %211 = vmatprep.subr.mxu0 0.0
    %212 = vmatpush1.msra.mxu0 0.0
    %213 = vmatprep.subr.mxu0 0.0
    %214 = vmatpush1.msra.mxu0 0.0
    %215 = vmatprep.subr.mxu0 0.0
    %216 = vmatpush1.msra.mxu0 0.0
    %217 = vmatprep.subr.mxu0 0.0
    %218 = vmatpush1.msra.mxu0 0.0
    %219 = vmatprep.mubr.f32.mxu0 0.0
    %220 = vmatmul.mubr.f32.gmra.mrb[0].mxu0 %v130
    %v221 = vpop.f32.mrb[0].mxu0
    %v222 = vadd.f32 %v153, %v221
    %v223 = vpop.f32.mrb[0].mxu0
    %224 = vmatprep.mubr.f32.mxu0 0.0
    %225 = vmatmul.mubr.f32.gmra.mrb[0].mxu0 %v131
    %v226 = vpop.f32.mrb[0].mxu0
    %v227 = vadd.f32 %v153, %v226
    %v228 = vpop.f32.mrb[0].mxu0
    %229 = vdwg.mxu0
    %v230 = vmax.f32 %v222, 0.0
    %v231 = vmax.f32 %v227, 0.0
    %v232 = vld [vmem:[#allocation4] sm:$0xff]
    %v233 = vld [vmem:[#allocation4 + $0x8] sm:$0xff]
    %v234 = vld [vmem:[#allocation4 + $0x10] sm:$0xff]
    %v235 = vld [vmem:[#allocation4 + $0x18] sm:$0xff]
    %v236 = vld [vmem:[#allocation4 + $0x20] sm:$0xff]
    %v237 = vld [vmem:[#allocation4 + $0x28] sm:$0xff]
    %v238 = vld [vmem:[#allocation4 + $0x30] sm:$0xff]
    %v239 = vld [vmem:[#allocation4 + $0x38] sm:$0xff]
    %v240 = vld [vmem:[#allocation4 + $0x40] sm:$0xff]
    %v241 = vld [vmem:[#allocation4 + $0x48] sm:$0xff]
    %v242 = vld [vmem:[#allocation4 + $0x50] sm:$0xff]
    %v243 = vld [vmem:[#allocation4 + $0x58] sm:$0xff]
    %v244 = vld [vmem:[#allocation4 + $0x60] sm:$0xff]
    %v245 = vld [vmem:[#allocation4 + $0x68] sm:$0xff]
    %v246 = vld [vmem:[#allocation4 + $0x70] sm:$0xff]
    %v247 = vld [vmem:[#allocation4 + $0x78] sm:$0xff]
    %v248 = vld [vmem:[%s6] sm:$0x1]
    %v250 = vlaneseq
    %v251 = vshrl.u32 %v250, 7
    %v252 = vsub.s32 0, %v251
    %v253 = vrot.slane %v248, %v252
    %255 = vmatprep.subr.mxu0 0.0
    %256 = vmatpush1.msra.mxu0 %v232
    %257 = vmatprep.subr.mxu0 0.0
    %258 = vmatpush1.msra.mxu0 %v233
    %259 = vmatprep.subr.mxu0 0.0
    %260 = vmatpush1.msra.mxu0 %v234
    %261 = vmatprep.subr.mxu0 0.0
    %262 = vmatpush1.msra.mxu0 %v235
    %263 = vmatprep.subr.mxu0 0.0
    %264 = vmatpush1.msra.mxu0 %v236
    %265 = vmatprep.subr.mxu0 0.0
    %266 = vmatpush1.msra.mxu0 %v237
    %267 = vmatprep.subr.mxu0 0.0
    %268 = vmatpush1.msra.mxu0 %v238
    %269 = vmatprep.subr.mxu0 0.0
    %270 = vmatpush1.msra.mxu0 %v239
    %271 = vmatprep.subr.mxu0 0.0
    %272 = vmatpush1.msra.mxu0 %v240
    %273 = vmatprep.subr.mxu0 0.0
    %274 = vmatpush1.msra.mxu0 %v241
    %275 = vmatprep.subr.mxu0 0.0
    %276 = vmatpush1.msra.mxu0 %v242
    %277 = vmatprep.subr.mxu0 0.0
    %278 = vmatpush1.msra.mxu0 %v243
    %279 = vmatprep.subr.mxu0 0.0
    %280 = vmatpush1.msra.mxu0 %v244
    %281 = vmatprep.subr.mxu0 0.0
    %282 = vmatpush1.msra.mxu0 %v245
    %283 = vmatprep.subr.mxu0 0.0
    %284 = vmatpush1.msra.mxu0 %v246
    %285 = vmatprep.subr.mxu0 0.0
    %286 = vmatpush1.msra.mxu0 %v247
    %287 = vmatprep.subr.mxu0 0.0
    %288 = vmatpush1.msra.mxu0 0.0
    %289 = vmatprep.subr.mxu0 0.0
    %290 = vmatpush1.msra.mxu0 0.0
    %291 = vmatprep.subr.mxu0 0.0
    %292 = vmatpush1.msra.mxu0 0.0
    %293 = vmatprep.subr.mxu0 0.0
    %294 = vmatpush1.msra.mxu0 0.0
    %295 = vmatprep.subr.mxu0 0.0
    %296 = vmatpush1.msra.mxu0 0.0
    %297 = vmatprep.subr.mxu0 0.0
    %298 = vmatpush1.msra.mxu0 0.0
    %299 = vmatprep.subr.mxu0 0.0
    %300 = vmatpush1.msra.mxu0 0.0
    %301 = vmatprep.subr.mxu0 0.0
    %302 = vmatpush1.msra.mxu0 0.0
    %303 = vmatprep.subr.mxu0 0.0
    %304 = vmatpush1.msra.mxu0 0.0
    %305 = vmatprep.subr.mxu0 0.0
    %306 = vmatpush1.msra.mxu0 0.0
    %307 = vmatprep.subr.mxu0 0.0
    %308 = vmatpush1.msra.mxu0 0.0
    %309 = vmatprep.subr.mxu0 0.0
    %310 = vmatpush1.msra.mxu0 0.0
    %311 = vmatprep.subr.mxu0 0.0
    %312 = vmatpush1.msra.mxu0 0.0
    %313 = vmatprep.subr.mxu0 0.0
    %314 = vmatpush1.msra.mxu0 0.0
    %315 = vmatprep.subr.mxu0 0.0
    %316 = vmatpush1.msra.mxu0 0.0
    %317 = vmatprep.subr.mxu0 0.0
    %318 = vmatpush1.msra.mxu0 0.0
    %319 = vmatprep.mubr.f32.mxu0 0.0
    %320 = vmatmul.mubr.f32.gmra.mrb[0].mxu0 %v230
    %v321 = vpop.f32.mrb[0].mxu0
    %v322 = vadd.f32 %v253, %v321
    %v323 = vpop.f32.mrb[0].mxu0
    %324 = vmatprep.mubr.f32.mxu0 0.0
    %325 = vmatmul.mubr.f32.gmra.mrb[0].mxu0 %v231
    %v326 = vpop.f32.mrb[0].mxu0
    %v327 = vadd.f32 %v253, %v326
    %v328 = vpop.f32.mrb[0].mxu0
    %329 = vdwg.mxu0
    %vm330 = vcmask 15360
    %331 = vst.msk [vmem:[%s7] sm:$0xff] %vm330, %v322
    %332 = vst.msk [vmem:[%s7 + $0x8] sm:$0xff] %vm330, %v327
    // Predicated region
    $region38: #{tpu_custom_call.1} parent=1 // pred_check
      _
    $region39: #{tpu_custom_call.1} parent=1 // pred_check_branch
      %334 = sbr.rel (0) target = $region41
    $region40: #{tpu_custom_call.1} parent=1 // pred_region
      _
    $region41: #{tpu_custom_call.1} parent=1 // pred_fallthru
      _
    // Predicated region
    $region42: #{tpu_custom_call.1} parent=1 // pred_check
      _
    $region43: #{tpu_custom_call.1} parent=1 // pred_check_branch
      %336 = sbr.rel (0) target = $region45
    $region44: #{tpu_custom_call.1} parent=1 // pred_region
      _
    $region45: #{tpu_custom_call.1} parent=1 // pred_fallthru
      _
    %337 = vsyncpa [#allocation3], 1
    %338 = vsyncpa [#allocation5], 1

</llo_original>
